<compile_context>
chip_gen: v5e
topology: v5e:2x2
jax: 0.10.0
libtpu: 0.0.40
codegen_flags: <defaults>
</compile_context>

<pallas_src>
import functools

import jax
import jax.numpy as jnp
from jax.experimental import pallas as pl
from jax.experimental.pallas import tpu as pltpu


def _pixel_ce_kernel(logits_ref, labels_ref, out_ref, *, ignore_label):
    """Per-pixel CE (reduction='none'); ignored pixels get loss 0."""
    x = logits_ref[0].astype(jnp.float32)      # (C, TH, W) — f32 math even for bf16 input
    lbl = labels_ref[0]                        # (TH, W) int32

    # Numerically stable log-sum-exp over the leading class axis (VPU passes,
    # no cross-lane XLU reduce).
    m = jnp.max(x, axis=0)                                     # (TH, W)
    lse = m + jnp.log(jnp.sum(jnp.exp(x - m[None]), axis=0))   # (TH, W)

    # Gather logits[label] via a one-hot select over the class axis.
    cls_idx = jax.lax.broadcasted_iota(jnp.int32, x.shape, dimension=0)  # (C, TH, W)
    x_lbl = jnp.sum(jnp.where(cls_idx == lbl[None], x, 0.0), axis=0)     # (TH, W)

    valid = lbl != ignore_label
    out_ref[0] = jnp.where(valid, lse - x_lbl, 0.0)            # lane-dense (TH, W) store


def _choose_tile_h(H, W, C, itemsize, budget_bytes=4 << 20):
    """Largest tile_h that divides H, satisfies the (8, 128) rule, fits the budget."""
    max_rows = max(1, budget_bytes // max(1, C * W * itemsize))
    if H <= max_rows:
        return H
    for cand in range(min(H, max_rows), 0, -1):
        if H % cand == 0 and cand % 8 == 0:
            return cand
    return H  # full extent is always layout-legal; correctness over tile budget


def pixel_ce_losses(logits_nchw, labels_nhw, *, ignore_label=-1, tile_h=None):
    """Returns per-pixel CE losses, flattened to shape (N*H*W,)."""
    N, C, H, W = logits_nchw.shape
    labels = labels_nhw.astype(jnp.int32)
    if tile_h is None:
        tile_h = _choose_tile_h(H, W, C, jnp.dtype(logits_nchw.dtype).itemsize)
    assert H % tile_h == 0, "tile_h must divide H"

    grid = (N, H // tile_h)
    out = pl.pallas_call(
        functools.partial(_pixel_ce_kernel, ignore_label=ignore_label),
        out_shape=jax.ShapeDtypeStruct((N, H, W), jnp.float32),
        grid_spec=pltpu.PrefetchScalarGridSpec(
            num_scalar_prefetch=0,
            grid=grid,
            in_specs=[
                pl.BlockSpec((1, C, tile_h, W), lambda n, h: (n, 0, h, 0)),
                pl.BlockSpec((1, tile_h, W), lambda n, h: (n, h, 0)),
            ],
            out_specs=pl.BlockSpec((1, tile_h, W), lambda n, h: (n, h, 0)),
        ),
        compiler_params=pltpu.CompilerParams(
            dimension_semantics=("parallel", "parallel")),
    )(logits_nchw, labels)
    return out.reshape(-1)


def ohem_ce(logits, labels, *, ignore_label=-1, ohem_threshold=0.7,
            n_min=100, weights=None):
    """JAX/Pallas equivalent of OhemCE.forward (class weight=None)."""
    thresh = -jnp.log(jnp.asarray(ohem_threshold, dtype=jnp.float32))

    pixel_losses = pixel_ce_losses(logits, labels, ignore_label=ignore_label)
    if weights is not None:
        pixel_losses = pixel_losses * weights.reshape(-1).astype(jnp.float32)

    # TODO(synk): the top-k OHEM selection has no clean Pallas TPU equivalent; it is
    # done in plain JAX.  lax.top_k(n_min + 1) replaces the original full descending
    # sort — only the top n_min losses and the (n_min)-th value are ever inspected.
    topk = jax.lax.top_k(pixel_losses, n_min + 1)[0]      # descending

    # Branch 1: keep everything above the threshold.
    above = pixel_losses > thresh
    cnt_above = jnp.sum(above)
    mean_above = jnp.sum(jnp.where(above, pixel_losses, 0.0)) / jnp.maximum(
        cnt_above, 1).astype(jnp.float32)

    # Branch 2: keep the top n_min losses.
    mean_topk = jnp.mean(topk[:n_min])

    take_above = topk[n_min] > thresh
    return jnp.where(take_above, mean_above, mean_topk)


if __name__ == "__main__":
    key = jax.random.PRNGKey(0)
    k_logits, k_labels, k_ignore = jax.random.split(key, 3)

    N, C, H, W = 2, 4, 16, 16          # small shapes consistent with segmentation use
    ignore_label = -1
    n_min = 100                        # must be < N*H*W = 512

    logits = jax.random.normal(k_logits, (N, C, H, W), dtype=jnp.float32) * 3.0
    labels = jax.random.randint(k_labels, (N, H, W), 0, C, dtype=jnp.int32)
    # sprinkle some ignored pixels
    ignore_mask = jax.random.uniform(k_ignore, (N, H, W)) < 0.1
    labels = jnp.where(ignore_mask, ignore_label, labels)

    loss = ohem_ce(logits, labels, ignore_label=ignore_label,
                   ohem_threshold=0.7, n_min=n_min)
    jax.block_until_ready(loss)

    # lightweight sanity check against a pure-JAX reference of the same math
    x = jnp.transpose(logits, (0, 2, 3, 1)).reshape(-1, C)
    lbl = labels.reshape(-1)
    logp = jax.nn.log_softmax(x, axis=-1)
    ref_pix = jnp.where(lbl != ignore_label,
                        -jnp.take_along_axis(
                            logp, jnp.clip(lbl, 0, C - 1)[:, None], axis=-1)[:, 0],
                        0.0)
    ref_sorted = jnp.sort(ref_pix)[::-1]
    thr = -jnp.log(jnp.float32(0.7))
    if ref_sorted[n_min] > thr:
        ref = jnp.mean(ref_pix[ref_pix > thr])
    else:
        ref = jnp.mean(ref_sorted[:n_min])
    assert jnp.allclose(loss, ref, atol=1e-5, rtol=1e-5), (loss, ref)

    print("KERNEL_OK")
</pallas_src>

<mosaic_0001>
module attributes {stable_mosaic.version = 11 : i64} {
  func.func @_pixel_ce_kernel(%arg0: i32, %arg1: i32, %arg2: memref<1x4x16x16xf32, #tpu.memory_space<vmem>>, %arg3: memref<1x16x16xi32, #tpu.memory_space<vmem>>, %arg4: memref<1x16x16xf32, #tpu.memory_space<vmem>>) attributes {dimension_semantics = [#tpu.dimension_semantics<parallel>, #tpu.dimension_semantics<parallel>], iteration_bounds = array<i64: 2, 1>, scalar_prefetch = 0 : i64, scratch_operands = 0 : i64, tpu.core_type = #tpu.core_type<tc>, window_params = [{transform_indices = @transform_0, window_bounds = array<i64: 1, 4, 16, 16>}, {transform_indices = @transform_1, window_bounds = array<i64: 1, 16, 16>}, {transform_indices = @transform_2, window_bounds = array<i64: 1, 16, 16>}]} {
    %c0 = arith.constant 0 : index
    %c0_0 = arith.constant 0 : index
    %c0_1 = arith.constant 0 : index
    %c0_2 = arith.constant 0 : index
    %0 = vector.load %arg2[%c0, %c0_0, %c0_1, %c0_2] : memref<1x4x16x16xf32, #tpu.memory_space<vmem>>, vector<1x4x16x16xf32>
    %1 = vector.shape_cast %0 : vector<1x4x16x16xf32> to vector<4x16x16xf32>
    %c0_3 = arith.constant 0 : index
    %c0_4 = arith.constant 0 : index
    %c0_5 = arith.constant 0 : index
    %2 = vector.load %arg3[%c0_3, %c0_4, %c0_5] : memref<1x16x16xi32, #tpu.memory_space<vmem>>, vector<1x16x16xi32>
    %3 = vector.shape_cast %2 : vector<1x16x16xi32> to vector<16x16xi32>
    %cst = arith.constant dense<0xFF800000> : vector<16x16xf32>
    %4 = vector.multi_reduction <maximumf>, %1, %cst [0] : vector<4x16x16xf32> to vector<16x16xf32>
    %5 = vector.shape_cast %4 : vector<16x16xf32> to vector<1x16x16xf32>
    %6 = vector.broadcast %5 : vector<1x16x16xf32> to vector<4x16x16xf32>
    %7 = arith.subf %1, %6 : vector<4x16x16xf32>
    %8 = math.exp %7 : vector<4x16x16xf32>
    %cst_6 = arith.constant dense<0.000000e+00> : vector<16x16xf32>
    %9 = vector.multi_reduction <add>, %8, %cst_6 [0] : vector<4x16x16xf32> to vector<16x16xf32>
    %10 = math.log %9 : vector<16x16xf32>
    %11 = arith.addf %4, %10 : vector<16x16xf32>
    %12 = tpu.iota {dimensions = array<i32: 0>} : vector<4x16x16xi32>
    %13 = vector.shape_cast %3 : vector<16x16xi32> to vector<1x16x16xi32>
    %14 = vector.broadcast %13 : vector<1x16x16xi32> to vector<4x16x16xi32>
    %15 = arith.cmpi eq, %12, %14 : vector<4x16x16xi32>
    %cst_7 = arith.constant 0.000000e+00 : f32
    %16 = vector.broadcast %cst_7 : f32 to vector<4x16x16xf32>
    %17 = arith.select %15, %1, %16 : vector<4x16x16xi1>, vector<4x16x16xf32>
    %cst_8 = arith.constant dense<0.000000e+00> : vector<16x16xf32>
    %18 = vector.multi_reduction <add>, %17, %cst_8 [0] : vector<4x16x16xf32> to vector<16x16xf32>
    %c-1_i32 = arith.constant -1 : i32
    %19 = vector.broadcast %c-1_i32 : i32 to vector<16x16xi32>
    %20 = arith.cmpi ne, %3, %19 : vector<16x16xi32>
    %21 = arith.subf %11, %18 : vector<16x16xf32>
    %cst_9 = arith.constant 0.000000e+00 : f32
    %22 = vector.broadcast %cst_9 : f32 to vector<16x16xf32>
    %23 = arith.select %20, %21, %22 : vector<16x16xi1>, vector<16x16xf32>
    %c0_10 = arith.constant 0 : index
    %c0_11 = arith.constant 0 : index
    %c0_12 = arith.constant 0 : index
    %24 = vector.load %arg4[%c0_10, %c0_11, %c0_12] : memref<1x16x16xf32, #tpu.memory_space<vmem>>, vector<1x16x16xf32>
    %25 = vector.shape_cast %24 : vector<1x16x16xf32> to vector<16x16xf32>
    %26 = vector.shape_cast %23 : vector<16x16xf32> to vector<1x16x16xf32>
    tpu.vector_store %arg4[%c0_10, %c0_11, %c0_12], %26 {strides = array<i32>} : memref<1x16x16xf32, #tpu.memory_space<vmem>>, vector<1x16x16xf32>,
    return
  }
  func.func @transform_0(%arg0: i32, %arg1: i32) -> (i32, i32, i32, i32) {
    %c0_i32 = arith.constant 0 : i32
    %c0_i32_0 = arith.constant 0 : i32
    %c0_i32_1 = arith.constant 0 : i32
    return %arg0, %c0_i32, %arg1, %c0_i32_0 : i32, i32, i32, i32
  }
  func.func @transform_1(%arg0: i32, %arg1: i32) -> (i32, i32, i32) {
    %c0_i32 = arith.constant 0 : i32
    %c0_i32_0 = arith.constant 0 : i32
    return %arg0, %arg1, %c0_i32 : i32, i32, i32
  }
  func.func @transform_2(%arg0: i32, %arg1: i32) -> (i32, i32, i32) {
    %c0_i32 = arith.constant 0 : i32
    %c0_i32_0 = arith.constant 0 : i32
    return %arg0, %arg1, %c0_i32 : i32, i32, i32
  }
}

</mosaic_0001>

<llo_original>
// kernel: tpu_custom_call.1
$region0: #{tpu_custom_call.1}
  #allocation0 [shape = 'u32[]', space=smem, size = 0x4, offset = 0x4, fixed_abs, tag = 'smem constant byte address 0x4 - core index']
  #allocation1 [shape = 'u32[72,128]{1,0:T(1,128)}', space=vmem, size = 0x9000, scoped, tag = 'internal scratch']
  %s0 = inlined_call_operand.hbm [shape: f32[2,4,16,16], index: 0, kind: input, shape index: {}]
  %s1 = inlined_call_operand.hbm [shape: s32[2,16,16], index: 1, kind: input, shape index: {}]
  %s2 = inlined_call_operand.hbm [shape: f32[2,16,16], index: 2, kind: output, shape index: {}]
  %s3 = sld [smem:[#allocation0]]
  $region49: #{tpu_custom_call.1} parent=0
    _
  %s5 = ssub.s32 1, %s3
  %s6 = scalar_select 0, %s5, %s3
  $region1: #{tpu_custom_call.1} parent=0
    #allocation2 [shape = 'u8[65536]{0}', space=vmem, size = 0x10000, scoped, tag = 'input window, operand 0']
    #allocation3 [shape = 's32[2]{0}', space=sflag, size = 0x8, scoped, tag = 'scoped memory for tpu_custom_call.1']
    #allocation4 [shape = 's32[2]{0}', space=sflag, size = 0x8, scoped, tag = 'scoped memory for tpu_custom_call.1']
    #allocation5 [shape = 'u8[16384]{0}', space=vmem, size = 0x4000, scoped, tag = 'input window, operand 1']
    #allocation6 [shape = 's32[2]{0}', space=sflag, size = 0x8, scoped, tag = 'scoped memory for tpu_custom_call.1']
    #allocation7 [shape = 'u8[16384]{0}', space=vmem, size = 0x4000, scoped, tag = 'output window, operand 0']
    %7 = vsyncpa [#allocation3], 0
    %s8 = scalar_lea.sflag [#allocation3], 1
    %9 = vsyncpa %s8, 0
    %10 = vsyncpa [#allocation6], 0
    %s11 = scalar_lea.sflag [#allocation6], 1
    %12 = vsyncpa %s11, 0
    %13 = vsyncpa [#allocation4], 0
    %s14 = scalar_lea.sflag [#allocation4], 1
    %15 = vsyncpa %s14, 0
    loop: start=0, step=1, limit=4
    $region2: #{tpu_custom_call.1} parent=1 // loop_pre_header
      _
    $region3: #{tpu_custom_call.1} parent=1 // loop_header
      %s17 = sphi 0, %s21
      %p18 = scmp.ge.s32.totalorder %s17, 4
      %s24 = sphi 0, %s36
      %s25 = sphi 0, %s32
      %s26 = sphi 0, %s24
      %s27 = sphi 0, %s25
      %s28 = sphi 0, %s26
      %s29 = sphi 0, %s27
      %s41 = sphi 0, %s43
      %s44 = sphi 0, %s41
      %s45 = sphi 0, %s44
      %s61 = sphi 0, %s45
      %s69 = sphi 0, %s71
      %s72 = sphi 0, %s69
      %s73 = sphi 0, %s72
      %s89 = sphi 0, %s73
      %s97 = sphi 0, %s99
      %s100 = sphi 0, %s97
      %s101 = sphi 0, %s100
      %s117 = sphi 0, %s101
    $region4: #{tpu_custom_call.1} parent=1 // loop_header_branch
      %20 = sbr.rel (%p18) target = $region8
    $region5: #{tpu_custom_call.1} parent=1 // loop_body
      %s22 = ssub.s32 %s17, 1
      %s23 = ssub.s32 %s17, 2
      %s30 = sadd.s32 1, %s25
      %p31 = scmp.ge.s32.totalorder %s30, 1
      %s32 = scalar_select %p31, 0, %s30
      %s33 = sadd.s32 1, %s24
      %s34 = scalar_select %p31, %s33, %s24
      %p35 = scmp.ge.s32.totalorder %s34, 2
      %s36 = scalar_select %p35, 0, %s34
      %s37 = ssub.s32 %s24, %s36
      %s38 = ssub.s32 %s25, %s32
      %s39 = sor.u32 %s37, %s38
      %p40 = scmp.eq.s32.totalorder %s39, 0
      %s42 = sadd.s32 %s41, 1
      %s43 = scalar_select %p40, %s41, %s42
      %p46 = pneg %p40
      %p47 = scmp.eq.s32.totalorder %s17, 1
      %p48 = por %p46, %p47
      %p49 = scmp.ne.s32.totalorder %s41, %s44
      %p50 = scmp.eq.s32.totalorder %s17, 0
      %p51 = por %p49, %p50
      %p52 = scmp.ne.s32.totalorder %s41, %s44
      %p53 = scmp.eq.s32.totalorder %s22, 1
      %p54 = por %p52, %p53
      %p55 = scmp.ne.s32.totalorder %s44, %s45
      %p56 = scmp.eq.s32.totalorder %s22, 0
      %p57 = por %p55, %p56
      %p58 = scmp.ne.s32.totalorder %s44, %s45
      %p59 = scmp.eq.s32.totalorder %s23, 1
      %p60 = por %p58, %p59
      %p62 = scmp.ne.s32.totalorder %s45, %s61
      %p63 = scmp.eq.s32.totalorder %s23, 0
      %p64 = por %p62, %p63
      %s65 = ssub.s32 %s24, %s36
      %s66 = ssub.s32 %s25, %s32
      %s67 = sor.u32 %s65, %s66
      %p68 = scmp.eq.s32.totalorder %s67, 0
      %s70 = sadd.s32 %s69, 1
      %s71 = scalar_select %p68, %s69, %s70
      %p74 = pneg %p68
      %p75 = scmp.eq.s32.totalorder %s17, 1
      %p76 = por %p74, %p75
      %p77 = scmp.ne.s32.totalorder %s69, %s72
      %p78 = scmp.eq.s32.totalorder %s17, 0
      %p79 = por %p77, %p78
      %p80 = scmp.ne.s32.totalorder %s69, %s72
      %p81 = scmp.eq.s32.totalorder %s22, 1
      %p82 = por %p80, %p81
      %p83 = scmp.ne.s32.totalorder %s72, %s73
      %p84 = scmp.eq.s32.totalorder %s22, 0
      %p85 = por %p83, %p84
      %p86 = scmp.ne.s32.totalorder %s72, %s73
      %p87 = scmp.eq.s32.totalorder %s23, 1
      %p88 = por %p86, %p87
      %p90 = scmp.ne.s32.totalorder %s73, %s89
      %p91 = scmp.eq.s32.totalorder %s23, 0
      %p92 = por %p90, %p91
      %s93 = ssub.s32 %s24, %s36
      %s94 = ssub.s32 %s25, %s32
      %s95 = sor.u32 %s93, %s94
      %p96 = scmp.eq.s32.totalorder %s95, 0
      %s98 = sadd.s32 %s97, 1
      %s99 = scalar_select %p96, %s97, %s98
      %p102 = pneg %p96
      %p103 = scmp.eq.s32.totalorder %s17, 1
      %p104 = por %p102, %p103
      %p105 = scmp.ne.s32.totalorder %s97, %s100
      %p106 = scmp.eq.s32.totalorder %s17, 0
      %p107 = por %p105, %p106
      %p108 = scmp.ne.s32.totalorder %s97, %s100
      %p109 = scmp.eq.s32.totalorder %s22, 1
      %p110 = por %p108, %p109
      %p111 = scmp.ne.s32.totalorder %s100, %s101
      %p112 = scmp.eq.s32.totalorder %s22, 0
      %p113 = por %p111, %p112
      %p114 = scmp.ne.s32.totalorder %s100, %s101
      %p115 = scmp.eq.s32.totalorder %s23, 1
      %p116 = por %p114, %p115
      %p118 = scmp.ne.s32.totalorder %s101, %s117
      %p119 = scmp.eq.s32.totalorder %s23, 0
      %p120 = por %p118, %p119
      %p121 = scmp.le.s32.totalorder 1, %s17
      %p122 = scmp.lt.s32.totalorder %s17, 3
      %p123 = pnand %p121, %p122
      %p124 = pneg %p123
      // Predicated region
      $region9: #{tpu_custom_call.1} parent=5 // pred_check
        _
      $region10: #{tpu_custom_call.1} parent=5 // pred_check_branch
        %126 = sbr.rel (%p123) target = $region12
      $region11: #{tpu_custom_call.1} parent=5 // pred_region
        %s127 = ssub.s32 %s17, 1
      $region12: #{tpu_custom_call.1} parent=5 // pred_fallthru
        _
      %p128 = scmp.lt.s32.totalorder %s17, 2
      // Predicated region
      $region13: #{tpu_custom_call.1} parent=5 // pred_check
        %p129 = pneg %p128
      $region14: #{tpu_custom_call.1} parent=5 // pred_check_branch
        %131 = sbr.rel (%p129) target = $region16
      $region15: #{tpu_custom_call.1} parent=5 // pred_region
        // Predicated region
        $region17: #{tpu_custom_call.1} parent=15 // pred_check
          %p132 = pneg %p51
        $region18: #{tpu_custom_call.1} parent=15 // pred_check_branch
          %134 = sbr.rel (%p132) target = $region20
        $region19: #{tpu_custom_call.1} parent=15 // pred_region
          %s135 = sand.u32 %s41, 1
          %s136 = scalar_lea.sflag [#allocation3], %s135
          %s137 = sand.u32 %s41, 1
          %s138 = smul.addr %s137, 64
          %s139 = scalar_lea.vmem [#allocation2], %s138
          %s140 = smul.u32 2, %s25
          %142 = vsyncadd %s136, 0
          %s143 = smul.addr %s24, 8
          %s144 = sadd.s32 %s140, %s143
          %s145 = smul.addr %s144, 8
          %s146 = scalar_lea.hbm %s0, %s145
          %s147 = sshll.u32 %s146, 4
          %s148 = int_to_ptr.hbm [resolvable:$true] %s147
          %s149 = sshll.u32 %s139, 4
          %s150 = int_to_ptr.vmem [resolvable:$true] %s149
          %155 = dma.hbm_to_vmem [thread:$0]  %s148, 1024, %s150, %s136, 128, 128, 8
        $region20: #{tpu_custom_call.1} parent=15 // pred_fallthru
          _
        // Predicated region
        $region21: #{tpu_custom_call.1} parent=15 // pred_check
          %p156 = pneg %p79
        $region22: #{tpu_custom_call.1} parent=15 // pred_check_branch
          %158 = sbr.rel (%p156) target = $region24
        $region23: #{tpu_custom_call.1} parent=15 // pred_region
          %s159 = sand.u32 %s69, 1
          %s160 = scalar_lea.sflag [#allocation6], %s159
          %s161 = sand.u32 %s69, 1
          %s162 = smul.addr %s161, 16
          %s163 = scalar_lea.vmem [#allocation5], %s162
          %s164 = smul.u32 2, %s25
          %166 = vsyncadd %s160, 0
          %s167 = smul.addr %s24, 2
          %s168 = sadd.s32 %s164, %s167
          %s169 = smul.addr %s168, 8
          %s170 = scalar_lea.hbm %s1, %s169
          %s171 = sshll.u32 %s170, 4
          %s172 = int_to_ptr.hbm [resolvable:$true] %s171
          %s173 = sshll.u32 %s163, 4
          %s174 = int_to_ptr.vmem [resolvable:$true] %s173
          %179 = dma.hbm_to_vmem [thread:$0]  %s172, 256, %s174, %s160, 128, 128, 8
        $region24: #{tpu_custom_call.1} parent=15 // pred_fallthru
          _
      $region16: #{tpu_custom_call.1} parent=5 // pred_fallthru
        _
      %p180 = scmp.le.s32.totalorder 1, %s17
      %p181 = scmp.lt.s32.totalorder %s17, 3
      %p182 = pnand %p180, %p181
      %p183 = pneg %p182
      // Predicated region
      $region25: #{tpu_custom_call.1} parent=5 // pred_check
        _
      $region26: #{tpu_custom_call.1} parent=5 // pred_check_branch
        %185 = sbr.rel (%p182) target = $region28
      $region27: #{tpu_custom_call.1} parent=5 // pred_region
        %s186 = ssub.s32 %s17, 1
        %s187 = sand.u32 %s44, 1
        %s188 = scalar_lea.sflag [#allocation3], %s187
        %s189 = sand.u32 %s44, 1
        %s190 = smul.addr %s189, 64
        %s191 = scalar_lea.vmem [#allocation2], %s190
        // Predicated region
        $region29: #{tpu_custom_call.1} parent=27 // pred_check
          %p192 = pneg %p57
        $region30: #{tpu_custom_call.1} parent=27 // pred_check_branch
          %194 = sbr.rel (%p192) target = $region32
        $region31: #{tpu_custom_call.1} parent=27 // pred_region
          %196 = dma.done %s188, 1024
        $region32: #{tpu_custom_call.1} parent=27 // pred_fallthru
          _
        %s197 = sand.u32 %s72, 1
        %s198 = scalar_lea.sflag [#allocation6], %s197
        %s199 = sand.u32 %s72, 1
        %s200 = smul.addr %s199, 16
        %s201 = scalar_lea.vmem [#allocation5], %s200
        // Predicated region
        $region33: #{tpu_custom_call.1} parent=27 // pred_check
          %p202 = pneg %p85
        $region34: #{tpu_custom_call.1} parent=27 // pred_check_branch
          %204 = sbr.rel (%p202) target = $region36
        $region35: #{tpu_custom_call.1} parent=27 // pred_region
          %206 = dma.done %s198, 256
        $region36: #{tpu_custom_call.1} parent=27 // pred_fallthru
          _
        %s207 = sand.u32 %s44, 1
        %s208 = scalar_lea.sflag [#allocation3], %s207
        %s209 = sand.u32 %s44, 1
        %s210 = smul.addr %s209, 64
        %s211 = scalar_lea.vmem [#allocation2], %s210
        %p212 = pneg %p57
        %p213 = pneg %p54
        %s214 = sand.u32 %s72, 1
        %s215 = scalar_lea.sflag [#allocation6], %s214
        %s216 = sand.u32 %s72, 1
        %s217 = smul.addr %s216, 16
        %s218 = scalar_lea.vmem [#allocation5], %s217
        %p219 = pneg %p85
        %p220 = pneg %p82
        %p221 = pneg %p113
        %p222 = pneg %p110
        %s223 = sand.u32 %s100, 1
        %s224 = scalar_lea.sflag [#allocation4], %s223
        %s225 = sand.u32 %s100, 1
        %s226 = smul.addr %s225, 16
        %s227 = scalar_lea.vmem [#allocation7], %s226
        %s228 = smul.u32 2, %s27
        %s229 = smul.u32 2, %s27
        %s230 = smul.u32 2, %s27
        %v231 = vld [vmem:[%s191] sm:$0xff]
        %v232 = vld [vmem:[%s191 + $0x8] sm:$0xff]
        %v233 = vld [vmem:[%s191 + $0x10] sm:$0xff]
        %v234 = vld [vmem:[%s191 + $0x18] sm:$0xff]
        %v235 = vld [vmem:[%s191 + $0x20] sm:$0xff]
        %v236 = vld [vmem:[%s191 + $0x28] sm:$0xff]
        %v237 = vld [vmem:[%s191 + $0x30] sm:$0xff]
        %v238 = vld [vmem:[%s191 + $0x38] sm:$0xff]
        %v239 = vld [vmem:[%s201] sm:$0xff]
        %v240 = vld [vmem:[%s201 + $0x8] sm:$0xff]
        %vm241 = vcmask 130048
        %v242 = vsel %vm241, %v231, -inf
        %v243 = vsel %vm241, %v233, -inf
        %v244 = vsel %vm241, %v235, -inf
        %v245 = vmax.f32 %v242, %v244
        %v246 = vsel %vm241, %v237, -inf
        %v247 = vmax.f32 %v243, %v246
        %v248 = vmax.f32 %v245, %v247
        %v249 = vsel %vm241, %v232, -inf
        %v250 = vsel %vm241, %v234, -inf
        %v251 = vsel %vm241, %v236, -inf
        %v252 = vmax.f32 %v249, %v251
        %v253 = vsel %vm241, %v238, -inf
        %v254 = vmax.f32 %v250, %v253
        %v255 = vmax.f32 %v252, %v254
        %v256 = vsub.f32 %v231, %v248
        %v257 = vsub.f32 %v232, %v255
        %v258 = vsub.f32 %v233, %v248
        %v259 = vsub.f32 %v234, %v255
        %v260 = vsub.f32 %v235, %v248
        %v261 = vsub.f32 %v236, %v255
        %v262 = vsub.f32 %v237, %v248
        %v263 = vsub.f32 %v238, %v255
        %v264 = vmul.f32 %v256, 1.442695
        %v265 = vpow.pop %v264
        %v266 = vmul.f32 %v257, 1.442695
        %v267 = vpow.pop %v266
        %v268 = vmul.f32 %v258, 1.442695
        %v269 = vpow.pop %v268
        %v270 = vmul.f32 %v259, 1.442695
        %v271 = vpow.pop %v270
        %v272 = vmul.f32 %v260, 1.442695
        %v273 = vpow.pop %v272
        %v274 = vmul.f32 %v261, 1.442695
        %v275 = vpow.pop %v274
        %v276 = vmul.f32 %v262, 1.442695
        %v277 = vpow.pop %v276
        %v278 = vmul.f32 %v263, 1.442695
        %v279 = vpow.pop %v278
        %v280 = vsel %vm241, %v265, 0.0
        %v281 = vsel %vm241, %v269, 0.0
        %v282 = vadd.f32 %v280, %v281
        %v283 = vsel %vm241, %v273, 0.0
        %v284 = vadd.f32 %v282, %v283
        %v285 = vsel %vm241, %v277, 0.0
        %v286 = vadd.f32 %v284, %v285
        %v287 = vsel %vm241, %v267, 0.0
        %v288 = vsel %vm241, %v271, 0.0
        %v289 = vadd.f32 %v287, %v288
        %v290 = vsel %vm241, %v275, 0.0
        %v291 = vadd.f32 %v289, %v290
        %v292 = vsel %vm241, %v279, 0.0
        %v293 = vadd.f32 %v291, %v292
        %v294 = vlog2.pop %v286
        %v295 = vmul.f32 %v294, 0.6931472
        %v296 = vlog2.pop %v293
        %v297 = vmul.f32 %v296, 0.6931472
        %v298 = vadd.f32 %v248, %v295
        %v299 = vadd.f32 %v255, %v297
        %vm300 = vcmp.eq.s32.totalorder %v239, 0
        %vm301 = vcmp.eq.s32.totalorder %v240, 0
        %vm302 = vcmp.eq.s32.totalorder %v239, 1
        %vm303 = vcmp.eq.s32.totalorder %v240, 1
        %vm304 = vcmp.eq.s32.totalorder %v239, 2
        %vm305 = vcmp.eq.s32.totalorder %v240, 2
        %vm306 = vcmp.eq.s32.totalorder %v239, 3
        %vm307 = vcmp.eq.s32.totalorder %v240, 3
        %v308 = vsel %vm300, %v231, 0.0
        %v309 = vsel %vm301, %v232, 0.0
        %v310 = vsel %vm302, %v233, 0.0
        %v311 = vsel %vm303, %v234, 0.0
        %v312 = vsel %vm304, %v235, 0.0
        %v313 = vsel %vm305, %v236, 0.0
        %v314 = vsel %vm306, %v237, 0.0
        %v315 = vsel %vm307, %v238, 0.0
        %v316 = vsel %vm241, %v308, 0.0
        %v317 = vsel %vm241, %v310, 0.0
        %v318 = vadd.f32 %v316, %v317
        %v319 = vsel %vm241, %v312, 0.0
        %v320 = vadd.f32 %v318, %v319
        %v321 = vsel %vm241, %v314, 0.0
        %v322 = vadd.f32 %v320, %v321
        %v323 = vsel %vm241, %v309, 0.0
        %v324 = vsel %vm241, %v311, 0.0
        %v325 = vadd.f32 %v323, %v324
        %v326 = vsel %vm241, %v313, 0.0
        %v327 = vadd.f32 %v325, %v326
        %v328 = vsel %vm241, %v315, 0.0
        %v329 = vadd.f32 %v327, %v328
        %vm330 = vcmp.ne.s32.totalorder %v239, 4294967295
        %vm331 = vcmp.ne.s32.totalorder %v240, 4294967295
        %v332 = vsub.f32 %v298, %v322
        %v333 = vsub.f32 %v299, %v329
        %v334 = vsel %vm330, %v332, 0.0
        %v335 = vsel %vm331, %v333, 0.0
        %336 = vst.msk [vmem:[%s227] sm:$0xff] %vm241, %v334
        %337 = vst.msk [vmem:[%s227 + $0x8] sm:$0xff] %vm241, %v335
        %s338 = sand.u32 %s100, 1
        %s339 = scalar_lea.sflag [#allocation4], %s338
        %s340 = sand.u32 %s100, 1
        %s341 = smul.addr %s340, 16
        %s342 = scalar_lea.vmem [#allocation7], %s341
        // Predicated region
        $region37: #{tpu_custom_call.1} parent=27 // pred_check
          %p343 = pneg %p110
        $region38: #{tpu_custom_call.1} parent=27 // pred_check_branch
          %345 = sbr.rel (%p343) target = $region40
        $region39: #{tpu_custom_call.1} parent=27 // pred_region
          %s346 = smul.u32 2, %s27
          %348 = vsyncadd %s339, 0
          %s349 = smul.addr %s26, 2
          %s350 = sadd.s32 %s346, %s349
          %s351 = smul.addr %s350, 8
          %s352 = scalar_lea.hbm %s2, %s351
          %s353 = sshll.u32 %s342, 4
          %s354 = int_to_ptr.vmem [resolvable:$true] %s353
          %s355 = sshll.u32 %s352, 4
          %s356 = int_to_ptr.hbm [resolvable:$true] %s355
          %361 = dma.vmem_to_hbm [thread:$0]  %s354, 256, %s356, %s339, 128, 128, 8
        $region40: #{tpu_custom_call.1} parent=27 // pred_fallthru
          _
      $region28: #{tpu_custom_call.1} parent=5 // pred_fallthru
        _
      %p362 = scmp.le.s32.totalorder 2, %s17
      // Predicated region
      $region41: #{tpu_custom_call.1} parent=5 // pred_check
        %p363 = pneg %p362
      $region42: #{tpu_custom_call.1} parent=5 // pred_check_branch
        %365 = sbr.rel (%p363) target = $region44
      $region43: #{tpu_custom_call.1} parent=5 // pred_region
        %s366 = ssub.s32 %s17, 2
        // Predicated region
        $region45: #{tpu_custom_call.1} parent=43 // pred_check
          %p367 = pneg %p116
        $region46: #{tpu_custom_call.1} parent=43 // pred_check_branch
          %369 = sbr.rel (%p367) target = $region48
        $region47: #{tpu_custom_call.1} parent=43 // pred_region
          %s370 = sand.u32 %s101, 1
          %s371 = scalar_lea.sflag [#allocation4], %s370
          %s372 = sand.u32 %s101, 1
          %s373 = smul.addr %s372, 16
          %s374 = scalar_lea.vmem [#allocation7], %s373
          %376 = dma.done %s371, 256
        $region48: #{tpu_custom_call.1} parent=43 // pred_fallthru
          _
      $region44: #{tpu_custom_call.1} parent=5 // pred_fallthru
        _
    $region6: #{tpu_custom_call.1} parent=1 // loop_footer
      %s21 = sadd.s32 1, %s17
    $region7: #{tpu_custom_call.1} parent=1 // loop_footer_branch
      %16 = sbr.rel target = $region3
    $region8: #{tpu_custom_call.1} parent=1 // loop_exit
      _
    %377 = vsyncpa [#allocation3], 1
    %s378 = scalar_lea.sflag [#allocation3], 1
    %379 = vsyncpa %s378, 1
    %380 = vsyncpa [#allocation6], 1
    %s381 = scalar_lea.sflag [#allocation6], 1
    %382 = vsyncpa %s381, 1
    %383 = vsyncpa [#allocation4], 1
    %s384 = scalar_lea.sflag [#allocation4], 1
    %385 = vsyncpa %s384, 1

</llo_original>
